<compile_context>
chip_gen: v7x
topology: tpu7x:2x2x1
jax: 0.10.0
libtpu: 0.0.40
codegen_flags: <defaults>
</compile_context>

<pallas_src>
import functools
import math

import jax
import jax.numpy as jnp
from jax.experimental import pallas as pl
from jax.experimental.pallas import tpu as pltpu


def _round_up(x, m):
    return ((x + m - 1) // m) * m


@functools.lru_cache(maxsize=1)
def _vmem_capacity_bytes():
    """Physical per-core VMEM (128 MiB v5e/v6e, 64 MiB v7x); defensive fallback."""
    try:
        info = pltpu.get_tpu_info()
        for name in ("vmem_capacity_bytes", "vmem_bytes", "vmem_size_bytes"):
            cap = getattr(info, name, None)
            if cap:
                return int(cap)
    except Exception:
        pass
    return 128 * 1024 * 1024


# ------------------------- kernel bodies -------------------------

def _dot_kernel(x_ref, w_ref, o_ref):
    # Single dot per tile (weight-resident or K-grid==1 path): MXU accumulates
    # internally, result written straight to the output tile.
    o_ref[...] = jnp.dot(
        x_ref[...], w_ref[...], preferred_element_type=jnp.float32
    ).astype(o_ref.dtype)


def _dot_bias_kernel(x_ref, w_ref, b_ref, o_ref):
    acc = jnp.dot(x_ref[...], w_ref[...], preferred_element_type=jnp.float32)
    o_ref[...] = (acc + b_ref[...].astype(jnp.float32)).astype(o_ref.dtype)


def _dot_acc_kernel(x_ref, w_ref, o_ref, acc_ref):
    # Generic tiled path with K reduction: f32 VMEM accumulator, init on k==0,
    # writeback on the last K step.  (Use a larger tk / the weight-resident path
    # to let the MXU accumulate internally instead of the per-step RMW.)
    k = pl.program_id(2)

    @pl.when(k == 0)
    def _():
        acc_ref[...] = jnp.zeros_like(acc_ref)

    acc_ref[...] += jnp.dot(x_ref[...], w_ref[...],
                            preferred_element_type=jnp.float32)

    @pl.when(k == pl.num_programs(2) - 1)
    def _():
        o_ref[...] = acc_ref[...].astype(o_ref.dtype)


def _dot_acc_bias_kernel(x_ref, w_ref, b_ref, o_ref, acc_ref):
    k = pl.program_id(2)

    @pl.when(k == 0)
    def _():
        acc_ref[...] = jnp.zeros_like(acc_ref)

    acc_ref[...] += jnp.dot(x_ref[...], w_ref[...],
                            preferred_element_type=jnp.float32)

    @pl.when(k == pl.num_programs(2) - 1)
    def _():
        # Bias add + cast kept in f32 (v5e has no bf16 VALU).
        o_ref[...] = (acc_ref[...] + b_ref[...].astype(jnp.float32)
                      ).astype(o_ref.dtype)


# ------------------------- wrapper -------------------------

@functools.partial(
    jax.jit,
    static_argnames=("compute_dtype", "tm", "tn", "tk",
                     "max_resident_weight_bytes"))
def linear_norm_forward(x, weight, bias=None, *,
                        compute_dtype=jnp.bfloat16,
                        tm=512, tn=512, tk=1024,
                        max_resident_weight_bytes=None):
    """Pallas equivalent of LinearNorm.forward.

    x:      (..., in_dim)
    weight: (out_dim, in_dim)  -- torch.nn.Linear convention
    bias:   (out_dim,) or None
    returns (..., out_dim) in x.dtype.

    NOTE (documented precision opt-out): by default x and weight are cast to
    bf16 in the wrapper (f32 MXU accumulation) for ~2x HBM traffic reduction.
    Pass compute_dtype=jnp.float32 for strict parity with PyTorch's f32 Linear.
    """
    in_dim = x.shape[-1]
    out_dim, w_in = weight.shape
    assert w_in == in_dim, "weight must be (out_dim, in_dim)"
    lead = x.shape[:-1]
    m = math.prod(lead)
    out_dtype = x.dtype

    comp = jnp.dtype(compute_dtype)
    comp_isize = comp.itemsize
    out_isize = jnp.dtype(out_dtype).itemsize

    # Cast + relayout ONCE outside the kernel (constant-folded for static W).
    x2d = x.reshape(m, in_dim).astype(comp)
    wT = weight.T.astype(comp)                    # (in_dim, out_dim)
    b2d = None if bias is None else bias.reshape(1, out_dim)

    # Per-generation VMEM budgets (v5e/v6e: 128 MiB, v7x: 64 MiB per TC).
    vmem_cap = _vmem_capacity_bytes()
    vmem_limit = int(min(64 * 1024 * 1024, int(vmem_cap * 0.7)))
    resident_cap = (min(16 * 1024 * 1024, vmem_cap // 8)
                    if max_resident_weight_bytes is None
                    else int(max_resident_weight_bytes))

    w_bytes = in_dim * out_dim * comp_isize
    bias_bytes = 0 if bias is None else out_dim * jnp.dtype(b2d.dtype).itemsize

    if w_bytes <= resident_cap:
        # ---- Weight-resident fast path: 1-D grid over M, whole W in VMEM ----
        tm_e = m if m <= tm else tm               # full-M block or 8-aligned tile
        grid_m = pl.cdiv(m, tm_e)
        grid = (grid_m,)
        dim_sem = ("parallel",)                   # shard M across TCs (v7x)
        in_specs = [
            pl.BlockSpec((tm_e, in_dim), lambda i: (i, 0)),    # streamed x
            pl.BlockSpec((in_dim, out_dim), lambda i: (0, 0)),  # resident W
        ]
        operands = [x2d, wT]
        if b2d is not None:
            in_specs.append(pl.BlockSpec((1, out_dim), lambda i: (0, 0)))
            operands.append(b2d)
            kernel = _dot_bias_kernel
        else:
            kernel = _dot_kernel
        out_specs = pl.BlockSpec((tm_e, out_dim), lambda i: (i, 0))
        scratch = []
        out_cols = out_dim
        bytes_accessed = (m * in_dim * comp_isize + w_bytes
                          + m * out_dim * out_isize + bias_bytes)
    else:
        # ---- Generic tiled path (large weights) ----
        tn_e = min(tn, _round_up(out_dim, 128))
        tk_e = min(tk, _round_up(in_dim, 128))
        kp = _round_up(in_dim, tk_e)
        np_ = _round_up(out_dim, tn_e)

        # Only the reduction (K) dim of x needs zero padding for correctness.
        if kp != in_dim:
            x2d = jnp.pad(x2d, ((0, 0), (0, kp - in_dim)))
        # Weight/bias padding is static -> constant-folded for inference weights.
        if (kp, np_) != (in_dim, out_dim):
            wT = jnp.pad(wT, ((0, kp - in_dim), (0, np_ - out_dim)))
        if b2d is not None and np_ != out_dim:
            b2d = jnp.pad(b2d, ((0, 0), (0, np_ - out_dim)))

        tm_e = m if m <= tm else tm               # M never zero-padded
        grid_m = pl.cdiv(m, tm_e)
        grid_n = np_ // tn_e
        grid_k = kp // tk_e

        if grid_k == 1:
            # Single K step: no accumulator round trip / pl.when phases.
            grid = (grid_m, grid_n)
            dim_sem = ("parallel", "parallel")
            in_specs = [
                pl.BlockSpec((tm_e, kp), lambda i, j: (i, 0)),
                pl.BlockSpec((kp, tn_e), lambda i, j: (0, j)),
            ]
            operands = [x2d, wT]
            if b2d is not None:
                in_specs.append(pl.BlockSpec((1, tn_e), lambda i, j: (0, j)))
                operands.append(b2d)
                kernel = _dot_bias_kernel
            else:
                kernel = _dot_kernel
            out_specs = pl.BlockSpec((tm_e, tn_e), lambda i, j: (i, j))
            scratch = []
        else:
            grid = (grid_m, grid_n, grid_k)
            dim_sem = ("parallel", "parallel", "arbitrary")
            in_specs = [
                pl.BlockSpec((tm_e, tk_e), lambda i, j, k: (i, k)),
                pl.BlockSpec((tk_e, tn_e), lambda i, j, k: (k, j)),
            ]
            operands = [x2d, wT]
            if b2d is not None:
                in_specs.append(pl.BlockSpec((1, tn_e), lambda i, j, k: (0, j)))
                operands.append(b2d)
                kernel = _dot_acc_bias_kernel
            else:
                kernel = _dot_acc_kernel
            out_specs = pl.BlockSpec((tm_e, tn_e), lambda i, j, k: (i, j))
            scratch = [pltpu.VMEM((tm_e, tn_e), jnp.float32)]

        out_cols = np_
        bytes_accessed = (grid_n * m * kp * comp_isize       # x re-read per N tile
                          + grid_m * kp * np_ * comp_isize   # W re-read per M tile
                          + m * np_ * out_isize
                          + grid_m * bias_bytes)

    cost = pl.CostEstimate(
        flops=2 * m * out_dim * in_dim,
        transcendentals=0,
        bytes_accessed=int(bytes_accessed),
    )

    out = pl.pallas_call(
        kernel,
        out_shape=jax.ShapeDtypeStruct((m, out_cols), out_dtype),
        grid_spec=pltpu.PrefetchScalarGridSpec(
            num_scalar_prefetch=0,
            grid=grid,
            in_specs=in_specs,
            out_specs=out_specs,
            scratch_shapes=scratch,
        ),
        compiler_params=pltpu.CompilerParams(
            dimension_semantics=dim_sem,
            vmem_limit_bytes=vmem_limit,
        ),
        cost_estimate=cost,
    )(*operands)

    if out_cols != out_dim:
        out = out[:, :out_dim]
    return out.reshape(*lead, out_dim)


def init_linear_norm_params(key, in_dim, out_dim, bias=True, w_init_gain='linear'):
    """Deterministic Xavier-uniform init matching LinearNorm.__init__."""
    gains = {'linear': 1.0, 'relu': 2.0 ** 0.5, 'tanh': 5.0 / 3.0, 'sigmoid': 1.0}
    gain = gains.get(w_init_gain, 1.0)
    k_w, k_b = jax.random.split(key)
    limit = gain * (6.0 / (in_dim + out_dim)) ** 0.5
    weight = jax.random.uniform(
        k_w, (out_dim, in_dim), dtype=jnp.float32, minval=-limit, maxval=limit)
    if bias:
        b_lim = 1.0 / (in_dim ** 0.5)  # torch.nn.Linear default bias init range
        b = jax.random.uniform(
            k_b, (out_dim,), dtype=jnp.float32, minval=-b_lim, maxval=b_lim)
    else:
        b = None
    return weight, b


if __name__ == "__main__":
    key = jax.random.PRNGKey(0)
    k_x, k_p, k_x2, k_p2, k_x3, k_p3 = jax.random.split(key, 6)

    # --- Case 1: small LinearNorm shape (weight-resident fast path), bias ---
    batch, seq, in_dim, out_dim = 2, 8, 32, 32
    x = jax.random.normal(k_x, (batch, seq, in_dim), dtype=jnp.float32)
    weight, bias = init_linear_norm_params(k_p, in_dim, out_dim,
                                           bias=True, w_init_gain='linear')

    # Strict-accuracy path (f32 operands on the MXU, f32 accumulation).
    y_f32 = jax.block_until_ready(
        linear_norm_forward(x, weight, bias, compute_dtype=jnp.float32))
    y_ref = jnp.einsum("bsi,oi->bso", x, weight, precision="highest") + bias
    assert y_f32.shape == (batch, seq, out_dim)
    assert jnp.allclose(y_f32, y_ref, atol=1e-4, rtol=1e-4)

    # Default documented fast path (bf16 operands, f32 accumulate).
    y_bf16 = jax.block_until_ready(
        linear_norm_forward(x, weight, bias, compute_dtype=jnp.bfloat16))
    x_b = x.astype(jnp.bfloat16).astype(jnp.float32)
    w_b = weight.astype(jnp.bfloat16).astype(jnp.float32)
    y_ref_b = jnp.einsum("bsi,oi->bso", x_b, w_b, precision="highest") + bias
    assert jnp.allclose(y_bf16, y_ref_b, atol=5e-3, rtol=5e-3)

    # --- Case 2: force the generic K-tiled path (3-D grid, f32 accumulator,
    #     ragged last M tile, no bias) by disabling weight residency. ---
    b2, s2, in2, out2 = 2, 160, 384, 256
    x2 = jax.random.normal(k_x2, (b2, s2, in2), dtype=jnp.float32)
    w2, _ = init_linear_norm_params(k_p2, in2, out2, bias=False)
    y2 = jax.block_until_ready(
        linear_norm_forward(x2, w2, None, compute_dtype=jnp.bfloat16,
                            tm=128, tn=128, tk=128,
                            max_resident_weight_bytes=0))
    x2b = x2.astype(jnp.bfloat16).astype(jnp.float32)
    w2b = w2.astype(jnp.bfloat16).astype(jnp.float32)
    y2_ref = jnp.einsum("bsi,oi->bso", x2b, w2b, precision="highest")
    assert y2.shape == (b2, s2, out2)
    assert jnp.allclose(y2, y2_ref, atol=5e-3, rtol=5e-3)

    # --- Case 3: force the tiled path with a single K step (2-D grid,
    #     no accumulator scratch), with bias. ---
    b3, s3, in3, out3 = 2, 8, 128, 256
    x3 = jax.random.normal(k_x3, (b3, s3, in3), dtype=jnp.float32)
    w3, bias3 = init_linear_norm_params(k_p3, in3, out3, bias=True)
    y3 = jax.block_until_ready(
        linear_norm_forward(x3, w3, bias3, compute_dtype=jnp.bfloat16,
                            tn=128, tk=256, max_resident_weight_bytes=0))
    x3b = x3.astype(jnp.bfloat16).astype(jnp.float32)
    w3b = w3.astype(jnp.bfloat16).astype(jnp.float32)
    y3_ref = jnp.einsum("bsi,oi->bso", x3b, w3b, precision="highest") + bias3
    assert y3.shape == (b3, s3, out3)
    assert jnp.allclose(y3, y3_ref, atol=5e-3, rtol=5e-3)

    print("KERNEL_OK")
</pallas_src>

<mosaic_0001>
module attributes {stable_mosaic.version = 11 : i64} {
  func.func @_dot_bias_kernel(%arg0: i32, %arg1: memref<16x32xf32, #tpu.memory_space<vmem>>, %arg2: memref<32x32xf32, #tpu.memory_space<vmem>>, %arg3: memref<1x32xf32, #tpu.memory_space<vmem>>, %arg4: memref<16x32xf32, #tpu.memory_space<vmem>>) attributes {dimension_semantics = [#tpu.dimension_semantics<parallel>], iteration_bounds = array<i64: 1>, scalar_prefetch = 0 : i64, scratch_operands = 0 : i64, tpu.core_type = #tpu.core_type<tc>, window_params = [{transform_indices = @transform_0, window_bounds = array<i64: 16, 32>}, {pipeline_mode = #tpu.pipeline_mode<synchronous>, transform_indices = @transform_1, window_bounds = array<i64: 32, 32>}, {pipeline_mode = #tpu.pipeline_mode<synchronous>, transform_indices = @transform_2, window_bounds = array<i64: 1, 32>}, {transform_indices = @transform_3, window_bounds = array<i64: 16, 32>}]} {
    %c0 = arith.constant 0 : index
    %c0_0 = arith.constant 0 : index
    %0 = vector.load %arg1[%c0, %c0_0] : memref<16x32xf32, #tpu.memory_space<vmem>>, vector<16x32xf32>
    %c0_1 = arith.constant 0 : index
    %c0_2 = arith.constant 0 : index
    %1 = vector.load %arg2[%c0_1, %c0_2] : memref<32x32xf32, #tpu.memory_space<vmem>>, vector<32x32xf32>
    %cst = arith.constant dense<0.000000e+00> : vector<16x32xf32>
    %2 = tpu.matmul %0, %1, %cst {dimension_numbers = #tpu.dot_dimension_numbers<[1], [0], [0], [1], [0, 0, 1, 1], [], []>} : vector<16x32xf32>, vector<32x32xf32>, vector<16x32xf32> -> vector<16x32xf32>
    %c0_3 = arith.constant 0 : index
    %c0_4 = arith.constant 0 : index
    %3 = vector.load %arg3[%c0_3, %c0_4] : memref<1x32xf32, #tpu.memory_space<vmem>>, vector<1x32xf32>
    %4 = vector.broadcast %3 : vector<1x32xf32> to vector<16x32xf32>
    %5 = arith.addf %2, %4 : vector<16x32xf32>
    %c0_5 = arith.constant 0 : index
    %c0_6 = arith.constant 0 : index
    %6 = vector.load %arg4[%c0_5, %c0_6] : memref<16x32xf32, #tpu.memory_space<vmem>>, vector<16x32xf32>
    tpu.vector_store %arg4[%c0_5, %c0_6], %5 {strides = array<i32>} : memref<16x32xf32, #tpu.memory_space<vmem>>, vector<16x32xf32>,
    return
  }
  func.func @transform_0(%arg0: i32) -> (i32, i32) {
    %c0_i32 = arith.constant 0 : i32
    %c0_i32_0 = arith.constant 0 : i32
    return %arg0, %c0_i32 : i32, i32
  }
  func.func @transform_1(%arg0: i32) -> (i32, i32) {
    %c0_i32 = arith.constant 0 : i32
    %c0_i32_0 = arith.constant 0 : i32
    %c0_i32_1 = arith.constant 0 : i32
    return %c0_i32, %c0_i32_0 : i32, i32
  }
  func.func @transform_2(%arg0: i32) -> (i32, i32) {
    %c0_i32 = arith.constant 0 : i32
    %c0_i32_0 = arith.constant 0 : i32
    %c0_i32_1 = arith.constant 0 : i32
    return %c0_i32, %c0_i32_0 : i32, i32
  }
  func.func @transform_3(%arg0: i32) -> (i32, i32) {
    %c0_i32 = arith.constant 0 : i32
    %c0_i32_0 = arith.constant 0 : i32
    return %arg0, %c0_i32 : i32, i32
  }
}

</mosaic_0001>

<llo_original>
// kernel: linear_norm_forward.1
$region0: #{linear_norm_forward.1}
  #allocation0 [shape = 'u32[]', space=smem, size = 0x4, offset = 0x4, fixed_abs, tag = 'smem constant byte address 0x4 - core index']
  #allocation1 [shape = 'u32[144,128]{1,0:T(1,128)}', space=vmem, size = 0x12000, scoped, tag = 'internal scratch']
  %s0 = inlined_call_operand.hbm [shape: f32[16,32], index: 0, kind: input, shape index: {}]
  %s1 = inlined_call_operand.hbm [shape: f32[32,32], index: 1, kind: input, shape index: {}]
  %s2 = inlined_call_operand.hbm [shape: f32[1,32], index: 2, kind: input, shape index: {}]
  %s3 = inlined_call_operand.hbm [shape: f32[16,32], index: 3, kind: output, shape index: {}]
  %s4 = sld [smem:[#allocation0]]
  $region34: #{linear_norm_forward.1} parent=0
    _
  %s6 = ssub.s32 1, %s4
  %s7 = scalar_select 0, %s6, %s4
  $region1: #{linear_norm_forward.1} parent=0
    #allocation2 [shape = 'u8[8192]{0}', space=vmem, size = 0x2000, scoped, tag = 'input window, operand 0, single buffered']
    #allocation3 [shape = 's32[1]{0}', space=sflag, size = 0x4, scoped, tag = 'scoped memory for linear_norm_forward.1']
    #allocation4 [shape = 's32[1]{0}', space=sflag, size = 0x4, scoped, tag = 'scoped memory for linear_norm_forward.1']
    #allocation5 [shape = 'u8[16384]{0}', space=vmem, size = 0x4000, scoped, tag = 'input window, operand 1, single buffered']
    #allocation6 [shape = 's32[1]{0}', space=sflag, size = 0x4, scoped, tag = 'scoped memory for linear_norm_forward.1']
    #allocation7 [shape = 'u8[512]{0}', space=vmem, size = 0x400, scoped, tag = 'input window, operand 2, single buffered']
    #allocation8 [shape = 'u8[8192]{0}', space=vmem, size = 0x2000, scoped, tag = 'output window, operand 0, single buffered']
    %8 = vsyncpa [#allocation3], 0
    %9 = vsyncpa [#allocation6], 0
    %10 = vsyncpa [#allocation4], 0
    // Predicated region
    $region2: #{linear_norm_forward.1} parent=1 // pred_check
      _
    $region3: #{linear_norm_forward.1} parent=1 // pred_check_branch
      %12 = sbr.rel (0) target = $region5
    $region4: #{linear_norm_forward.1} parent=1 // pred_region
      %s14 = ssub.s32 256, 256
      %15 = vsyncadd [#allocation3], %s14
      %s16 = sshll.u32 [#allocation2], 4
      %s17 = int_to_ptr.vmem [resolvable:$true] %s16
      %22 = dma.hbm_to_vmem [thread:$0]  %s0, 256, %s17, [#allocation3], 128, 128, 8
    $region5: #{linear_norm_forward.1} parent=1 // pred_fallthru
      _
    // Predicated region
    $region6: #{linear_norm_forward.1} parent=1 // pred_check
      _
    $region7: #{linear_norm_forward.1} parent=1 // pred_check_branch
      %24 = sbr.rel (0) target = $region9
    $region8: #{linear_norm_forward.1} parent=1 // pred_region
      %s26 = ssub.s32 512, 512
      %27 = vsyncadd [#allocation6], %s26
      %s28 = sshll.u32 [#allocation5], 4
      %s29 = int_to_ptr.vmem [resolvable:$true] %s28
      %34 = dma.hbm_to_vmem [thread:$0]  %s1, 512, %s29, [#allocation6], 128, 128, 8
    $region9: #{linear_norm_forward.1} parent=1 // pred_fallthru
      _
    // Predicated region
    $region10: #{linear_norm_forward.1} parent=1 // pred_check
      _
    $region11: #{linear_norm_forward.1} parent=1 // pred_check_branch
      %36 = sbr.rel (0) target = $region13
    $region12: #{linear_norm_forward.1} parent=1 // pred_region
      %s38 = ssub.s32 16, 16
      %39 = vsyncadd [#allocation6], %s38
      %s41 = sshll.u32 [#allocation7], 4
      %s42 = int_to_ptr.vmem [resolvable:$true] %s41
      %44 = dma.hbm_to_vmem [thread:$0]  %s2, 16, %s42, [#allocation6]
    $region13: #{linear_norm_forward.1} parent=1 // pred_fallthru
      _
    // Predicated region
    $region14: #{linear_norm_forward.1} parent=1 // pred_check
      _
    $region15: #{linear_norm_forward.1} parent=1 // pred_check_branch
      %46 = sbr.rel (0) target = $region17
    $region16: #{linear_norm_forward.1} parent=1 // pred_region
      %47 = dma.done [#allocation3], 256
    $region17: #{linear_norm_forward.1} parent=1 // pred_fallthru
      _
    // Predicated region
    $region18: #{linear_norm_forward.1} parent=1 // pred_check
      _
    $region19: #{linear_norm_forward.1} parent=1 // pred_check_branch
      %49 = sbr.rel (0) target = $region21
    $region20: #{linear_norm_forward.1} parent=1 // pred_region
      %50 = dma.done [#allocation6], 512
    $region21: #{linear_norm_forward.1} parent=1 // pred_fallthru
      _
    // Predicated region
    $region22: #{linear_norm_forward.1} parent=1 // pred_check
      _
    $region23: #{linear_norm_forward.1} parent=1 // pred_check_branch
      %52 = sbr.rel (0) target = $region25
    $region24: #{linear_norm_forward.1} parent=1 // pred_region
      %53 = dma.done [#allocation6], 16
    $region25: #{linear_norm_forward.1} parent=1 // pred_fallthru
      _
    %v54 = vld [vmem:[#allocation2] sm:$0xff]
    %v55 = vld [vmem:[#allocation2 + $0x8] sm:$0xff]
    %v56 = vld [vmem:[#allocation5] sm:$0xff]
    %v57 = vld [vmem:[#allocation5 + $0x8] sm:$0xff]
    %v58 = vld [vmem:[#allocation5 + $0x10] sm:$0xff]
    %v59 = vld [vmem:[#allocation5 + $0x18] sm:$0xff]
    %v60 = vld [vmem:[#allocation7] sm:$0x1]
    %v62 = vlaneseq
    %v63 = vshrl.u32 %v62, 7
    %v64 = vsub.s32 0, %v63
    %v65 = vrot.slane %v60, %v64
    %vm67 = vcmask 261120
    %v69 = vsel %vm67, %v54, 0
    %v72 = vsel %vm67, %v55, 0
    %74 = vmatprep.subr.mxu0 0.0
    %75 = vmatpush1.msra.mxu0 %v56
    %76 = vmatprep.subr.mxu0 0.0
    %77 = vmatpush1.msra.mxu0 %v57
    %78 = vmatprep.subr.mxu0 0.0
    %79 = vmatpush1.msra.mxu0 %v58
    %80 = vmatprep.subr.mxu0 0.0
    %81 = vmatpush1.msra.mxu0 %v59
    %82 = vmatprep.subr.mxu0 0.0
    %83 = vmatpush1.msra.mxu0 0.0
    %84 = vmatprep.subr.mxu0 0.0
    %85 = vmatpush1.msra.mxu0 0.0
    %86 = vmatprep.subr.mxu0 0.0
    %87 = vmatpush1.msra.mxu0 0.0
    %88 = vmatprep.subr.mxu0 0.0
    %89 = vmatpush1.msra.mxu0 0.0
    %90 = vmatprep.subr.mxu0 0.0
    %91 = vmatpush1.msra.mxu0 0.0
    %92 = vmatprep.subr.mxu0 0.0
    %93 = vmatpush1.msra.mxu0 0.0
    %94 = vmatprep.subr.mxu0 0.0
    %95 = vmatpush1.msra.mxu0 0.0
    %96 = vmatprep.subr.mxu0 0.0
    %97 = vmatpush1.msra.mxu0 0.0
    %98 = vmatprep.subr.mxu0 0.0
    %99 = vmatpush1.msra.mxu0 0.0
    %100 = vmatprep.subr.mxu0 0.0
    %101 = vmatpush1.msra.mxu0 0.0
    %102 = vmatprep.subr.mxu0 0.0
    %103 = vmatpush1.msra.mxu0 0.0
    %104 = vmatprep.subr.mxu0 0.0
    %105 = vmatpush1.msra.mxu0 0.0
    %106 = vmatprep.subr.mxu0 0.0
    %107 = vmatpush1.msra.mxu0 0.0
    %108 = vmatprep.subr.mxu0 0.0
    %109 = vmatpush1.msra.mxu0 0.0
    %110 = vmatprep.subr.mxu0 0.0
    %111 = vmatpush1.msra.mxu0 0.0
    %112 = vmatprep.subr.mxu0 0.0
    %113 = vmatpush1.msra.mxu0 0.0
    %114 = vmatprep.subr.mxu0 0.0
    %115 = vmatpush1.msra.mxu0 0.0
    %116 = vmatprep.subr.mxu0 0.0
    %117 = vmatpush1.msra.mxu0 0.0
    %118 = vmatprep.subr.mxu0 0.0
    %119 = vmatpush1.msra.mxu0 0.0
    %120 = vmatprep.subr.mxu0 0.0
    %121 = vmatpush1.msra.mxu0 0.0
    %122 = vmatprep.subr.mxu0 0.0
    %123 = vmatpush1.msra.mxu0 0.0
    %124 = vmatprep.subr.mxu0 0.0
    %125 = vmatpush1.msra.mxu0 0.0
    %126 = vmatprep.subr.mxu0 0.0
    %127 = vmatpush1.msra.mxu0 0.0
    %128 = vmatprep.subr.mxu0 0.0
    %129 = vmatpush1.msra.mxu0 0.0
    %130 = vmatprep.subr.mxu0 0.0
    %131 = vmatpush1.msra.mxu0 0.0
    %132 = vmatprep.subr.mxu0 0.0
    %133 = vmatpush1.msra.mxu0 0.0
    %134 = vmatprep.subr.mxu0 0.0
    %135 = vmatpush1.msra.mxu0 0.0
    %136 = vmatprep.subr.mxu0 0.0
    %137 = vmatpush1.msra.mxu0 0.0
    %138 = vmatprep.mubr.f32.mxu0 0.0
    %139 = vmatmul.mubr.f32.gmra.mrb[0].mxu0 %v69
    %v140 = vpop.f32.mrb[0].mxu0
    %v141 = vadd.f32 %v65, %v140
    %v142 = vpop.f32.mrb[0].mxu0
    %143 = vmatprep.mubr.f32.mxu0 0.0
    %144 = vmatmul.mubr.f32.gmra.mrb[0].mxu0 %v72
    %v145 = vpop.f32.mrb[0].mxu0
    %v146 = vadd.f32 %v65, %v145
    %v147 = vpop.f32.mrb[0].mxu0
    %148 = vdwg.mxu0
    %149 = vst.msk [vmem:[#allocation8] sm:$0xff] %vm67, %v141
    %150 = vst.msk [vmem:[#allocation8 + $0x8] sm:$0xff] %vm67, %v146
    // Predicated region
    $region26: #{linear_norm_forward.1} parent=1 // pred_check
      _
    $region27: #{linear_norm_forward.1} parent=1 // pred_check_branch
      %152 = sbr.rel (0) target = $region29
    $region28: #{linear_norm_forward.1} parent=1 // pred_region
      %s154 = ssub.s32 256, 256
      %155 = vsyncadd [#allocation4], %s154
      %s156 = sshll.u32 [#allocation8], 4
      %s157 = int_to_ptr.vmem [resolvable:$true] %s156
      %162 = dma.vmem_to_hbm [thread:$0]  %s157, 256, %s3, [#allocation4], 128, 128, 8
    $region29: #{linear_norm_forward.1} parent=1 // pred_fallthru
      _
    // Predicated region
    $region30: #{linear_norm_forward.1} parent=1 // pred_check
      _
    $region31: #{linear_norm_forward.1} parent=1 // pred_check_branch
      %164 = sbr.rel (0) target = $region33
    $region32: #{linear_norm_forward.1} parent=1 // pred_region
      %165 = dma.done [#allocation4], 256
    $region33: #{linear_norm_forward.1} parent=1 // pred_fallthru
      _
    %166 = vsyncpa [#allocation3], 1
    %167 = vsyncpa [#allocation6], 1
    %168 = vsyncpa [#allocation4], 1

</llo_original>
